<compile_context>
chip_gen: v7x
topology: tpu7x:2x2x1
jax: 0.10.0
libtpu: 0.0.40
codegen_flags: <defaults>
</compile_context>

<pallas_src>
import functools
import math
from typing import NamedTuple, Optional

import jax
import jax.numpy as jnp
from jax.experimental import pallas as pl
from jax.experimental.pallas import tpu as pltpu


# -----------------------------------------------------------------------------
# Pallas kernel: one fused affine over row tiles
#   x_ref    : (tile_r, Din)   packed context rows (the hot, HBM-bound input)
#   w_ref    : (Din, Qout)     folded (block-diagonal) weight, resident in VMEM
#   bias_ref : (tile_r, Qout)  per-row bias (pa + pe + b_eff), f32, lane-dense
#   o_ref    : (tile_r, Qout)
# -----------------------------------------------------------------------------
def _affine_rows_kernel(x_ref, w_ref, bias_ref, o_ref):
    acc = jnp.dot(x_ref[...], w_ref[...], preferred_element_type=jnp.float32)
    o_ref[...] = (acc + bias_ref[...]).astype(o_ref.dtype)


def _choose_tiling(R, max_tile):
    """Pick (tile, grid) over R rows.

    - Tiny problems: one full-extent block.
    - Otherwise cap the tile at ~R/2 (>=2 grid steps so v7x's two TensorCores
      both get work via dimension_semantics=("parallel",)).
    - Prefer the largest exact divisor (no ragged boundary block) unless it is
      much smaller than the cap, in which case a large ragged tile wins (per-
      step pipeline overhead dominates for tiny tiles).
    """
    if R <= 16:
        return R, 1                                   # single full-extent block
    half = max(8, (R // 2) // 8 * 8)                  # >=2 blocks when possible
    cap = min(max_tile, half)
    cap = max(8, cap - cap % 8)
    best = 0
    for cand in range(cap, 7, -8):
        if R % cand == 0:
            best = cand
            break
    if best >= max(8, cap // 4):
        return best, R // best
    return cap, pl.cdiv(R, cap)                       # ragged last block (masked)


def _affine_rows(x2d, w, bias2d, *, out_dtype=jnp.float32, max_tile=512):
    """y[m, :] = x2d[m, :] @ w + bias2d[m, :], tiled over rows on the MXU."""
    R, Din = x2d.shape
    Dw, Qout = w.shape
    assert Din == Dw, (Din, Dw)
    tile_r, grid_r = _choose_tiling(R, max_tile)

    # Per-step VMEM (double-buffered x/bias/out + resident weight) stays well
    # under the scoped default (16 MiB v5e / 32 MiB v6e,v7x) at tile_r<=512
    # packed rows, so no vmem_limit_bytes override is needed.
    return pl.pallas_call(
        _affine_rows_kernel,
        out_shape=jax.ShapeDtypeStruct((R, Qout), out_dtype),
        grid=(grid_r,),
        in_specs=[
            pl.BlockSpec((tile_r, Din), lambda i: (i, 0)),   # packed x row tile
            pl.BlockSpec((Dw, Qout), lambda i: (0, 0)),      # folded weight (resident)
            pl.BlockSpec((tile_r, Qout), lambda i: (i, 0)),  # per-row bias tile
        ],
        out_specs=pl.BlockSpec((tile_r, Qout), lambda i: (i, 0)),
        compiler_params=pltpu.CompilerParams(
            dimension_semantics=("parallel",)),
    )(x2d, w, bias2d)


# -----------------------------------------------------------------------------
# One-time weight preparation (hoist out of the per-call path for static weights)
# -----------------------------------------------------------------------------
class FoldedParams(NamedTuple):
    w_a: jax.Array              # (d_model, Q) f32 — slice for c_a (constant over tau)
    w_e: jax.Array              # (E, Q)      f32 — slice for embedded_future (constant over targets)
    b_eff: jax.Array            # (Q,)        f32 — folded bias
    w_t: jax.Array              # (d_model, Q) compute dtype — slice for c_t (hot path)
    w_bd: Optional[jax.Array]   # (P*d_model, P*Q) compute dtype — block-diagonal packed w_t
    pack: int                   # lane packing factor P: (P*Q) % 128 == 0
    compute_dtype: object


def prepare_local_decoder_params(params, d_model, *,
                                 compute_dtype=jnp.bfloat16, max_pack_cols=8192):
    """Fold Linear->Dropout->Linear->Dropout->Linear (eval mode) into one affine
    and pre-build the lane-dense block-diagonal weight."""
    w1, b1, w2, b2, w3, b3 = (jnp.asarray(a, jnp.float32) for a in params)
    Q = w3.shape[1]

    # y = x @ W_eff + b_eff  (exact up to fp reordering; dropout = identity).
    w_eff = (w1 @ w2) @ w3                            # (F_in, Q)
    b_eff = ((b1 @ w2 + b2) @ w3 + b3).reshape(Q)     # (Q,)

    w_a = w_eff[:d_model]                             # (d_model, Q)
    w_t = w_eff[d_model:2 * d_model]                  # (d_model, Q)
    w_e = w_eff[2 * d_model:]                         # (E, Q)

    # Lane packing factor: smallest P with (P*Q) % 128 == 0.
    P = 128 // math.gcd(128, Q)
    if P * d_model > max_pack_cols:                   # safety cap on weight width
        P = 1
    if P > 1:
        eye = jnp.eye(P, dtype=jnp.float32)
        w_bd = jnp.einsum('ij,dq->idjq', eye, w_t)    # (P, d_model, P, Q)
        w_bd = w_bd.reshape(P * d_model, P * Q).astype(compute_dtype)
    else:
        w_bd = None

    return FoldedParams(w_a=w_a, w_e=w_e, b_eff=b_eff,
                        w_t=w_t.astype(compute_dtype), w_bd=w_bd,
                        pack=P, compute_dtype=compute_dtype)


# -----------------------------------------------------------------------------
# LocalDecoder forward (glue in plain JAX + Pallas hot path)
# -----------------------------------------------------------------------------
def local_decoder_forward(embedded_future, global_output, params, *,
                          d_model, tau, num_targets,
                          max_tile_rows=512, out_dtype=jnp.float32):
    """Inference forward of MQRNN LocalDecoder.

    `params` is either the raw 6-tuple (w1,b1,w2,b2,w3,b3) (weights in (in,out)
    layout, biases (1,out)) or a FoldedParams from prepare_local_decoder_params
    (preferred when weights are static: the fold/pack is then done once).
    """
    prep = (params if isinstance(params, FoldedParams)
            else prepare_local_decoder_params(params, d_model))
    B = global_output.shape[0]
    T = num_targets
    Q = prep.b_eff.shape[0]
    P = prep.pack

    # x = [c_a | c_t | ef]:  c_a is constant over tau, ef constant over targets,
    # so only c_t flows through the Pallas kernel; the other two become a bias.
    c_a = global_output[..., :d_model]                                   # (B,T,d_model)
    c_t = global_output[..., d_model:].reshape(B, T, tau, d_model)       # (B,T,tau,d_model)

    pa = jnp.einsum('btd,dq->btq', c_a.astype(jnp.float32), prep.w_a)    # (B,T,Q)
    pe = jnp.einsum('bsd,dq->bsq',
                    embedded_future.astype(jnp.float32), prep.w_e)       # (B,tau,Q)
    bias = pa[:, :, None, :] + pe[:, None, :, :] + prep.b_eff            # (B,T,tau,Q) f32

    M = B * T * tau
    if prep.w_bd is not None and M % P == 0:
        # Lane-dense packed path: 128-wide bias/out, 1024-wide x, dense vld/vst.
        R = M // P
        x2d = c_t.reshape(R, P * d_model).astype(prep.compute_dtype)
        bias2d = bias.reshape(R, P * Q)
        out2d = _affine_rows(x2d, prep.w_bd, bias2d,
                             out_dtype=out_dtype, max_tile=max_tile_rows)
    else:
        # Fallback (M not divisible by P): unpacked rows, masked narrow lanes.
        x2d = c_t.reshape(M, d_model).astype(prep.compute_dtype)
        bias2d = bias.reshape(M, Q)
        out2d = _affine_rows(x2d, prep.w_t, bias2d,
                             out_dtype=out_dtype, max_tile=max_tile_rows * max(P, 1))
    return out2d.reshape(B, T, tau, Q)


# Pure-JAX reference of the original 3-layer forward (for correctness checks).
def local_decoder_reference(embedded_future, global_output, params, *,
                            d_model, tau, num_targets):
    B = global_output.shape[0]
    E = embedded_future.shape[-1]
    c_a = jnp.broadcast_to(global_output[..., :d_model][:, :, None, :],
                           (B, num_targets, tau, d_model))
    c_t = global_output[..., d_model:].reshape(B, num_targets, tau, -1)
    ef = jnp.broadcast_to(embedded_future[:, None, :, :],
                          (B, num_targets, tau, E))
    x = jnp.concatenate([c_a, c_t, ef], axis=-1).astype(jnp.float32)
    w1, b1, w2, b2, w3, b3 = params
    h1 = x @ w1 + b1[0]
    h2 = h1 @ w2 + b2[0]
    return h2 @ w3 + b3[0]


if __name__ == "__main__":
    # Module hyper-parameters (small, consistent with the forward's shape math).
    d_embedding = 8
    n_embedding = [5, 7]     # len = 2  -> embedded dim E = 16
    d_model = 32
    tau = 8
    num_targets = 2
    num_quantiles = 4
    batch = 2

    E = d_embedding * len(n_embedding)
    F_in = 2 * d_model + E                    # 80
    H1 = d_model * 2                          # 64
    H2 = d_model                              # 32
    Q = num_quantiles                         # 4

    key = jax.random.PRNGKey(0)
    keys = jax.random.split(key, 16)

    # PyTorch Linear weight is (out, in); we store the transposed (in, out).
    w1 = jax.random.normal(keys[0], (F_in, H1), jnp.float32) * 0.05
    b1 = jax.random.normal(keys[1], (1, H1), jnp.float32) * 0.05
    w2 = jax.random.normal(keys[2], (H1, H2), jnp.float32) * 0.05
    b2 = jax.random.normal(keys[3], (1, H2), jnp.float32) * 0.05
    w3 = jax.random.normal(keys[4], (H2, Q), jnp.float32) * 0.05
    b3 = jax.random.normal(keys[5], (1, Q), jnp.float32) * 0.05
    params = (w1, b1, w2, b2, w3, b3)

    # Prepare folded weights ONCE (item 7): exact f32 path and default bf16 path.
    prep_f32 = prepare_local_decoder_params(params, d_model, compute_dtype=jnp.float32)
    prep_bf16 = prepare_local_decoder_params(params, d_model)        # bf16 default

    def run_case(kname, gname, B, T, TAU, prep, tol):
        ef = jax.random.normal(keys[kname], (B, TAU, E), jnp.float32)
        go = jax.random.normal(keys[gname], (B, T, d_model * (TAU + 1)), jnp.float32)
        out = jax.block_until_ready(
            local_decoder_forward(ef, go, prep, d_model=d_model, tau=TAU,
                                  num_targets=T))
        exp = jax.block_until_ready(
            local_decoder_reference(ef, go, params, d_model=d_model, tau=TAU,
                                    num_targets=T))
        assert out.shape == (B, T, TAU, Q), out.shape
        err = float(jnp.max(jnp.abs(out - exp)))
        assert err < tol, (B, T, TAU, err)
        return err

    # 1) Module-default shapes: f32 (exact up to fold) and bf16 (default) paths.
    #    M = 32 -> one packed row (R = 1), single block.
    run_case(6, 7, batch, num_targets, tau, prep_f32, 1e-4)
    run_case(6, 7, batch, num_targets, tau, prep_bf16, 5e-3)

    # 2) Multi-batch, R = 9 packed rows -> single full-extent block.
    run_case(8, 9, 4, 3, 24, prep_f32, 1e-4)

    # 3) M = 1024 -> R = 32 packed rows -> 2 grid steps (exercises the
    #    "parallel" tiled path that feeds both v7x TensorCores).
    run_case(10, 11, 4, 8, 32, prep_f32, 1e-4)
    run_case(10, 11, 4, 8, 32, prep_bf16, 1e-2)

    # 4) R = 41 packed rows -> ragged last block (masked boundary writes).
    run_case(12, 13, 1, 41, 32, prep_f32, 1e-4)

    # 5) M = 30 not divisible by the pack factor -> unpacked fallback path.
    run_case(14, 15, 2, 3, 5, prep_f32, 1e-4)

    print("KERNEL_OK")
</pallas_src>

<mosaic_0001>
module attributes {stable_mosaic.version = 11 : i64} {
  func.func @_affine_rows_kernel(%arg0: i32, %arg1: memref<1x1024xf32, #tpu.memory_space<vmem>>, %arg2: memref<1024x128xf32, #tpu.memory_space<vmem>>, %arg3: memref<1x128xf32, #tpu.memory_space<vmem>>, %arg4: memref<1x128xf32, #tpu.memory_space<vmem>>) attributes {dimension_semantics = [#tpu.dimension_semantics<parallel>], iteration_bounds = array<i64: 1>, scalar_prefetch = 0 : i64, scratch_operands = 0 : i64, tpu.core_type = #tpu.core_type<tc>, window_params = [{transform_indices = @transform_0, window_bounds = array<i64: 1, 1024>}, {pipeline_mode = #tpu.pipeline_mode<synchronous>, transform_indices = @transform_1, window_bounds = array<i64: 1024, 128>}, {transform_indices = @transform_2, window_bounds = array<i64: 1, 128>}, {transform_indices = @transform_3, window_bounds = array<i64: 1, 128>}]} {
    %c0 = arith.constant 0 : index
    %c0_0 = arith.constant 0 : index
    %0 = vector.load %arg1[%c0, %c0_0] : memref<1x1024xf32, #tpu.memory_space<vmem>>, vector<1x1024xf32>
    %c0_1 = arith.constant 0 : index
    %c0_2 = arith.constant 0 : index
    %1 = vector.load %arg2[%c0_1, %c0_2] : memref<1024x128xf32, #tpu.memory_space<vmem>>, vector<1024x128xf32>
    %cst = arith.constant dense<0.000000e+00> : vector<1x128xf32>
    %2 = tpu.matmul %0, %1, %cst {dimension_numbers = #tpu.dot_dimension_numbers<[1], [0], [0], [1], [0, 0, 1, 1], [], []>} : vector<1x1024xf32>, vector<1024x128xf32>, vector<1x128xf32> -> vector<1x128xf32>
    %c0_3 = arith.constant 0 : index
    %c0_4 = arith.constant 0 : index
    %3 = vector.load %arg3[%c0_3, %c0_4] : memref<1x128xf32, #tpu.memory_space<vmem>>, vector<1x128xf32>
    %4 = arith.addf %2, %3 : vector<1x128xf32>
    %c0_5 = arith.constant 0 : index
    %c0_6 = arith.constant 0 : index
    %5 = vector.load %arg4[%c0_5, %c0_6] : memref<1x128xf32, #tpu.memory_space<vmem>>, vector<1x128xf32>
    tpu.vector_store %arg4[%c0_5, %c0_6], %4 {strides = array<i32>} : memref<1x128xf32, #tpu.memory_space<vmem>>, vector<1x128xf32>,
    return
  }
  func.func @transform_0(%arg0: i32) -> (i32, i32) {
    %c0_i32 = arith.constant 0 : i32
    %c0_i32_0 = arith.constant 0 : i32
    return %arg0, %c0_i32 : i32, i32
  }
  func.func @transform_1(%arg0: i32) -> (i32, i32) {
    %c0_i32 = arith.constant 0 : i32
    %c0_i32_0 = arith.constant 0 : i32
    %c0_i32_1 = arith.constant 0 : i32
    return %c0_i32, %c0_i32_0 : i32, i32
  }
  func.func @transform_2(%arg0: i32) -> (i32, i32) {
    %c0_i32 = arith.constant 0 : i32
    %c0_i32_0 = arith.constant 0 : i32
    return %arg0, %c0_i32 : i32, i32
  }
  func.func @transform_3(%arg0: i32) -> (i32, i32) {
    %c0_i32 = arith.constant 0 : i32
    %c0_i32_0 = arith.constant 0 : i32
    return %arg0, %c0_i32 : i32, i32
  }
}

</mosaic_0001>

<llo_original>
// kernel: tpu_custom_call.1
$region0: #{tpu_custom_call.1}
  #allocation0 [shape = 'u32[]', space=smem, size = 0x4, offset = 0x4, fixed_abs, tag = 'smem constant byte address 0x4 - core index']
  #allocation1 [shape = 'u32[144,128]{1,0:T(1,128)}', space=vmem, size = 0x12000, scoped, tag = 'internal scratch']
  %s0 = inlined_call_operand.hbm [shape: f32[1,1024], index: 0, kind: input, shape index: {}]
  %s1 = inlined_call_operand.hbm [shape: f32[1024,128], index: 1, kind: input, shape index: {}]
  %s2 = inlined_call_operand.vmem [shape: f32[1,128], index: 2, kind: input, shape index: {}]
  %s3 = inlined_call_operand.hbm [shape: f32[1,128], index: 3, kind: output, shape index: {}]
  %s4 = sld [smem:[#allocation0]]
  $region30: #{tpu_custom_call.1} parent=0
    _
  %s6 = ssub.s32 1, %s4
  %s7 = scalar_select 0, %s6, %s4
  $region1: #{tpu_custom_call.1} parent=0
    #allocation2 [shape = 'u8[4096]{0}', space=vmem, size = 0x1000, scoped, tag = 'input window, operand 0, single buffered']
    #allocation3 [shape = 's32[1]{0}', space=sflag, size = 0x4, scoped, tag = 'scoped memory for tpu_custom_call.1']
    #allocation4 [shape = 's32[1]{0}', space=sflag, size = 0x4, scoped, tag = 'scoped memory for tpu_custom_call.1']
    #allocation5 [shape = 'u8[524288]{0}', space=vmem, size = 0x80000, scoped, tag = 'input window, operand 1, single buffered']
    #allocation6 [shape = 's32[1]{0}', space=sflag, size = 0x4, scoped, tag = 'scoped memory for tpu_custom_call.1']
    #allocation7 [shape = 'u8[512]{0}', space=vmem, size = 0x400, scoped, tag = 'output window, operand 0, single buffered']
    %8 = vsyncpa [#allocation3], 0
    %9 = vsyncpa [#allocation6], 0
    %10 = vsyncpa [#allocation4], 0
    // Predicated region
    $region2: #{tpu_custom_call.1} parent=1 // pred_check
      _
    $region3: #{tpu_custom_call.1} parent=1 // pred_check_branch
      %12 = sbr.rel (0) target = $region5
    $region4: #{tpu_custom_call.1} parent=1 // pred_region
      %s14 = ssub.s32 128, 128
      %15 = vsyncadd [#allocation3], %s14
      %s17 = sshll.u32 [#allocation2], 4
      %s18 = int_to_ptr.vmem [resolvable:$true] %s17
      %20 = dma.hbm_to_vmem [thread:$0]  %s0, 128, %s18, [#allocation3]
    $region5: #{tpu_custom_call.1} parent=1 // pred_fallthru
      _
    // Predicated region
    $region6: #{tpu_custom_call.1} parent=1 // pred_check
      _
    $region7: #{tpu_custom_call.1} parent=1 // pred_check_branch
      %22 = sbr.rel (0) target = $region9
    $region8: #{tpu_custom_call.1} parent=1 // pred_region
      %s24 = ssub.s32 16384, 16384
      %25 = vsyncadd [#allocation6], %s24
      %s26 = sshll.u32 [#allocation5], 4
      %s27 = int_to_ptr.vmem [resolvable:$true] %s26
      %32 = dma.hbm_to_vmem [thread:$0]  %s1, 16384, %s27, [#allocation6], 128, 128, 8
    $region9: #{tpu_custom_call.1} parent=1 // pred_fallthru
      _
    // Predicated region
    $region10: #{tpu_custom_call.1} parent=1 // pred_check
      _
    $region11: #{tpu_custom_call.1} parent=1 // pred_check_branch
      %34 = sbr.rel (0) target = $region13
    $region12: #{tpu_custom_call.1} parent=1 // pred_region
      _
    $region13: #{tpu_custom_call.1} parent=1 // pred_fallthru
      _
    // Predicated region
    $region14: #{tpu_custom_call.1} parent=1 // pred_check
      _
    $region15: #{tpu_custom_call.1} parent=1 // pred_check_branch
      %36 = sbr.rel (0) target = $region17
    $region16: #{tpu_custom_call.1} parent=1 // pred_region
      %37 = dma.done [#allocation3], 128
    $region17: #{tpu_custom_call.1} parent=1 // pred_fallthru
      _
    // Predicated region
    $region18: #{tpu_custom_call.1} parent=1 // pred_check
      _
    $region19: #{tpu_custom_call.1} parent=1 // pred_check_branch
      %39 = sbr.rel (0) target = $region21
    $region20: #{tpu_custom_call.1} parent=1 // pred_region
      %40 = dma.done [#allocation6], 16384
    $region21: #{tpu_custom_call.1} parent=1 // pred_fallthru
      _
    %v41 = vld [vmem:[#allocation2] sm:$0xff]
    %v42 = vld [vmem:[#allocation5] sm:$0xff]
    %v43 = vld [vmem:[#allocation5 + $0x8] sm:$0xff]
    %v44 = vld [vmem:[#allocation5 + $0x10] sm:$0xff]
    %v45 = vld [vmem:[#allocation5 + $0x18] sm:$0xff]
    %v46 = vld [vmem:[#allocation5 + $0x20] sm:$0xff]
    %v47 = vld [vmem:[#allocation5 + $0x28] sm:$0xff]
    %v48 = vld [vmem:[#allocation5 + $0x30] sm:$0xff]
    %v49 = vld [vmem:[#allocation5 + $0x38] sm:$0xff]
    %v50 = vld [vmem:[#allocation5 + $0x40] sm:$0xff]
    %v51 = vld [vmem:[#allocation5 + $0x48] sm:$0xff]
    %v52 = vld [vmem:[#allocation5 + $0x50] sm:$0xff]
    %v53 = vld [vmem:[#allocation5 + $0x58] sm:$0xff]
    %v54 = vld [vmem:[#allocation5 + $0x60] sm:$0xff]
    %v55 = vld [vmem:[#allocation5 + $0x68] sm:$0xff]
    %v56 = vld [vmem:[#allocation5 + $0x70] sm:$0xff]
    %v57 = vld [vmem:[#allocation5 + $0x78] sm:$0xff]
    %v58 = vld [vmem:[#allocation5 + $0x80] sm:$0xff]
    %v59 = vld [vmem:[#allocation5 + $0x88] sm:$0xff]
    %v60 = vld [vmem:[#allocation5 + $0x90] sm:$0xff]
    %v61 = vld [vmem:[#allocation5 + $0x98] sm:$0xff]
    %v62 = vld [vmem:[#allocation5 + $0xa0] sm:$0xff]
    %v63 = vld [vmem:[#allocation5 + $0xa8] sm:$0xff]
    %v64 = vld [vmem:[#allocation5 + $0xb0] sm:$0xff]
    %v65 = vld [vmem:[#allocation5 + $0xb8] sm:$0xff]
    %v66 = vld [vmem:[#allocation5 + $0xc0] sm:$0xff]
    %v67 = vld [vmem:[#allocation5 + $0xc8] sm:$0xff]
    %v68 = vld [vmem:[#allocation5 + $0xd0] sm:$0xff]
    %v69 = vld [vmem:[#allocation5 + $0xd8] sm:$0xff]
    %v70 = vld [vmem:[#allocation5 + $0xe0] sm:$0xff]
    %v71 = vld [vmem:[#allocation5 + $0xe8] sm:$0xff]
    %v72 = vld [vmem:[#allocation5 + $0xf0] sm:$0xff]
    %v73 = vld [vmem:[#allocation5 + $0xf8] sm:$0xff]
    %v74 = vld [vmem:[#allocation5 + $0x100] sm:$0xff]
    %v75 = vld [vmem:[#allocation5 + $0x108] sm:$0xff]
    %v76 = vld [vmem:[#allocation5 + $0x110] sm:$0xff]
    %v77 = vld [vmem:[#allocation5 + $0x118] sm:$0xff]
    %v78 = vld [vmem:[#allocation5 + $0x120] sm:$0xff]
    %v79 = vld [vmem:[#allocation5 + $0x128] sm:$0xff]
    %v80 = vld [vmem:[#allocation5 + $0x130] sm:$0xff]
    %v81 = vld [vmem:[#allocation5 + $0x138] sm:$0xff]
    %v82 = vld [vmem:[#allocation5 + $0x140] sm:$0xff]
    %v83 = vld [vmem:[#allocation5 + $0x148] sm:$0xff]
    %v84 = vld [vmem:[#allocation5 + $0x150] sm:$0xff]
    %v85 = vld [vmem:[#allocation5 + $0x158] sm:$0xff]
    %v86 = vld [vmem:[#allocation5 + $0x160] sm:$0xff]
    %v87 = vld [vmem:[#allocation5 + $0x168] sm:$0xff]
    %v88 = vld [vmem:[#allocation5 + $0x170] sm:$0xff]
    %v89 = vld [vmem:[#allocation5 + $0x178] sm:$0xff]
    %v90 = vld [vmem:[#allocation5 + $0x180] sm:$0xff]
    %v91 = vld [vmem:[#allocation5 + $0x188] sm:$0xff]
    %v92 = vld [vmem:[#allocation5 + $0x190] sm:$0xff]
    %v93 = vld [vmem:[#allocation5 + $0x198] sm:$0xff]
    %v94 = vld [vmem:[#allocation5 + $0x1a0] sm:$0xff]
    %v95 = vld [vmem:[#allocation5 + $0x1a8] sm:$0xff]
    %v96 = vld [vmem:[#allocation5 + $0x1b0] sm:$0xff]
    %v97 = vld [vmem:[#allocation5 + $0x1b8] sm:$0xff]
    %v98 = vld [vmem:[#allocation5 + $0x1c0] sm:$0xff]
    %v99 = vld [vmem:[#allocation5 + $0x1c8] sm:$0xff]
    %v100 = vld [vmem:[#allocation5 + $0x1d0] sm:$0xff]
    %v101 = vld [vmem:[#allocation5 + $0x1d8] sm:$0xff]
    %v102 = vld [vmem:[#allocation5 + $0x1e0] sm:$0xff]
    %v103 = vld [vmem:[#allocation5 + $0x1e8] sm:$0xff]
    %v104 = vld [vmem:[#allocation5 + $0x1f0] sm:$0xff]
    %v105 = vld [vmem:[#allocation5 + $0x1f8] sm:$0xff]
    %v106 = vld [vmem:[#allocation5 + $0x200] sm:$0xff]
    %v107 = vld [vmem:[#allocation5 + $0x208] sm:$0xff]
    %v108 = vld [vmem:[#allocation5 + $0x210] sm:$0xff]
    %v109 = vld [vmem:[#allocation5 + $0x218] sm:$0xff]
    %v110 = vld [vmem:[#allocation5 + $0x220] sm:$0xff]
    %v111 = vld [vmem:[#allocation5 + $0x228] sm:$0xff]
    %v112 = vld [vmem:[#allocation5 + $0x230] sm:$0xff]
    %v113 = vld [vmem:[#allocation5 + $0x238] sm:$0xff]
    %v114 = vld [vmem:[#allocation5 + $0x240] sm:$0xff]
    %v115 = vld [vmem:[#allocation5 + $0x248] sm:$0xff]
    %v116 = vld [vmem:[#allocation5 + $0x250] sm:$0xff]
    %v117 = vld [vmem:[#allocation5 + $0x258] sm:$0xff]
    %v118 = vld [vmem:[#allocation5 + $0x260] sm:$0xff]
    %v119 = vld [vmem:[#allocation5 + $0x268] sm:$0xff]
    %v120 = vld [vmem:[#allocation5 + $0x270] sm:$0xff]
    %v121 = vld [vmem:[#allocation5 + $0x278] sm:$0xff]
    %v122 = vld [vmem:[#allocation5 + $0x280] sm:$0xff]
    %v123 = vld [vmem:[#allocation5 + $0x288] sm:$0xff]
    %v124 = vld [vmem:[#allocation5 + $0x290] sm:$0xff]
    %v125 = vld [vmem:[#allocation5 + $0x298] sm:$0xff]
    %v126 = vld [vmem:[#allocation5 + $0x2a0] sm:$0xff]
    %v127 = vld [vmem:[#allocation5 + $0x2a8] sm:$0xff]
    %v128 = vld [vmem:[#allocation5 + $0x2b0] sm:$0xff]
    %v129 = vld [vmem:[#allocation5 + $0x2b8] sm:$0xff]
    %v130 = vld [vmem:[#allocation5 + $0x2c0] sm:$0xff]
    %v131 = vld [vmem:[#allocation5 + $0x2c8] sm:$0xff]
    %v132 = vld [vmem:[#allocation5 + $0x2d0] sm:$0xff]
    %v133 = vld [vmem:[#allocation5 + $0x2d8] sm:$0xff]
    %v134 = vld [vmem:[#allocation5 + $0x2e0] sm:$0xff]
    %v135 = vld [vmem:[#allocation5 + $0x2e8] sm:$0xff]
    %v136 = vld [vmem:[#allocation5 + $0x2f0] sm:$0xff]
    %v137 = vld [vmem:[#allocation5 + $0x2f8] sm:$0xff]
    %v138 = vld [vmem:[#allocation5 + $0x300] sm:$0xff]
    %v139 = vld [vmem:[#allocation5 + $0x308] sm:$0xff]
    %v140 = vld [vmem:[#allocation5 + $0x310] sm:$0xff]
    %v141 = vld [vmem:[#allocation5 + $0x318] sm:$0xff]
    %v142 = vld [vmem:[#allocation5 + $0x320] sm:$0xff]
    %v143 = vld [vmem:[#allocation5 + $0x328] sm:$0xff]
    %v144 = vld [vmem:[#allocation5 + $0x330] sm:$0xff]
    %v145 = vld [vmem:[#allocation5 + $0x338] sm:$0xff]
    %v146 = vld [vmem:[#allocation5 + $0x340] sm:$0xff]
    %v147 = vld [vmem:[#allocation5 + $0x348] sm:$0xff]
    %v148 = vld [vmem:[#allocation5 + $0x350] sm:$0xff]
    %v149 = vld [vmem:[#allocation5 + $0x358] sm:$0xff]
    %v150 = vld [vmem:[#allocation5 + $0x360] sm:$0xff]
    %v151 = vld [vmem:[#allocation5 + $0x368] sm:$0xff]
    %v152 = vld [vmem:[#allocation5 + $0x370] sm:$0xff]
    %v153 = vld [vmem:[#allocation5 + $0x378] sm:$0xff]
    %v154 = vld [vmem:[#allocation5 + $0x380] sm:$0xff]
    %v155 = vld [vmem:[#allocation5 + $0x388] sm:$0xff]
    %v156 = vld [vmem:[#allocation5 + $0x390] sm:$0xff]
    %v157 = vld [vmem:[#allocation5 + $0x398] sm:$0xff]
    %v158 = vld [vmem:[#allocation5 + $0x3a0] sm:$0xff]
    %v159 = vld [vmem:[#allocation5 + $0x3a8] sm:$0xff]
    %v160 = vld [vmem:[#allocation5 + $0x3b0] sm:$0xff]
    %v161 = vld [vmem:[#allocation5 + $0x3b8] sm:$0xff]
    %v162 = vld [vmem:[#allocation5 + $0x3c0] sm:$0xff]
    %v163 = vld [vmem:[#allocation5 + $0x3c8] sm:$0xff]
    %v164 = vld [vmem:[#allocation5 + $0x3d0] sm:$0xff]
    %v165 = vld [vmem:[#allocation5 + $0x3d8] sm:$0xff]
    %v166 = vld [vmem:[#allocation5 + $0x3e0] sm:$0xff]
    %v167 = vld [vmem:[#allocation5 + $0x3e8] sm:$0xff]
    %v168 = vld [vmem:[#allocation5 + $0x3f0] sm:$0xff]
    %v169 = vld [vmem:[#allocation5 + $0x3f8] sm:$0xff]
    %v170 = vld [vmem:[%s2] sm:$0x1]
    %v172 = vlaneseq
    %v173 = vshrl.u32 %v172, 7
    %v174 = vsub.s32 0, %v173
    %v175 = vrot.slane %v41, %v174
    %v176 = vlaneseq
    %v177 = vshrl.u32 %v176, 7
    %v178 = vsub.s32 1, %v177
    %v179 = vrot.slane %v41, %v178
    %v180 = vlaneseq
    %v181 = vshrl.u32 %v180, 7
    %v182 = vsub.s32 2, %v181
    %v183 = vrot.slane %v41, %v182
    %v184 = vlaneseq
    %v185 = vshrl.u32 %v184, 7
    %v186 = vsub.s32 3, %v185
    %v187 = vrot.slane %v41, %v186
    %v188 = vlaneseq
    %v189 = vshrl.u32 %v188, 7
    %v190 = vsub.s32 4, %v189
    %v191 = vrot.slane %v41, %v190
    %v192 = vlaneseq
    %v193 = vshrl.u32 %v192, 7
    %v194 = vsub.s32 5, %v193
    %v195 = vrot.slane %v41, %v194
    %v196 = vlaneseq
    %v197 = vshrl.u32 %v196, 7
    %v198 = vsub.s32 6, %v197
    %v199 = vrot.slane %v41, %v198
    %v200 = vlaneseq
    %v201 = vshrl.u32 %v200, 7
    %v202 = vsub.s32 7, %v201
    %v203 = vrot.slane %v41, %v202
    %212 = vmatprep.subr.mxu0 0.0
    %213 = vmatpush1.msra.mxu0 %v42
    %214 = vmatprep.subr.mxu0 0.0
    %215 = vmatpush1.msra.mxu0 %v43
    %216 = vmatprep.subr.mxu0 0.0
    %217 = vmatpush1.msra.mxu0 %v44
    %218 = vmatprep.subr.mxu0 0.0
    %219 = vmatpush1.msra.mxu0 %v45
    %220 = vmatprep.subr.mxu0 0.0
    %221 = vmatpush1.msra.mxu0 %v46
    %222 = vmatprep.subr.mxu0 0.0
    %223 = vmatpush1.msra.mxu0 %v47
    %224 = vmatprep.subr.mxu0 0.0
    %225 = vmatpush1.msra.mxu0 %v48
    %226 = vmatprep.subr.mxu0 0.0
    %227 = vmatpush1.msra.mxu0 %v49
    %228 = vmatprep.subr.mxu0 0.0
    %229 = vmatpush1.msra.mxu0 %v50
    %230 = vmatprep.subr.mxu0 0.0
    %231 = vmatpush1.msra.mxu0 %v51
    %232 = vmatprep.subr.mxu0 0.0
    %233 = vmatpush1.msra.mxu0 %v52
    %234 = vmatprep.subr.mxu0 0.0
    %235 = vmatpush1.msra.mxu0 %v53
    %236 = vmatprep.subr.mxu0 0.0
    %237 = vmatpush1.msra.mxu0 %v54
    %238 = vmatprep.subr.mxu0 0.0
    %239 = vmatpush1.msra.mxu0 %v55
    %240 = vmatprep.subr.mxu0 0.0
    %241 = vmatpush1.msra.mxu0 %v56
    %242 = vmatprep.subr.mxu0 0.0
    %243 = vmatpush1.msra.mxu0 %v57
    %244 = vmatprep.subr.mxu0 0.0
    %245 = vmatpush1.msra.mxu0 %v58
    %246 = vmatprep.subr.mxu0 0.0
    %247 = vmatpush1.msra.mxu0 %v59
    %248 = vmatprep.subr.mxu0 0.0
    %249 = vmatpush1.msra.mxu0 %v60
    %250 = vmatprep.subr.mxu0 0.0
    %251 = vmatpush1.msra.mxu0 %v61
    %252 = vmatprep.subr.mxu0 0.0
    %253 = vmatpush1.msra.mxu0 %v62
    %254 = vmatprep.subr.mxu0 0.0
    %255 = vmatpush1.msra.mxu0 %v63
    %256 = vmatprep.subr.mxu0 0.0
    %257 = vmatpush1.msra.mxu0 %v64
    %258 = vmatprep.subr.mxu0 0.0
    %259 = vmatpush1.msra.mxu0 %v65
    %260 = vmatprep.subr.mxu0 0.0
    %261 = vmatpush1.msra.mxu0 %v66
    %262 = vmatprep.subr.mxu0 0.0
    %263 = vmatpush1.msra.mxu0 %v67
    %264 = vmatprep.subr.mxu0 0.0
    %265 = vmatpush1.msra.mxu0 %v68
    %266 = vmatprep.subr.mxu0 0.0
    %267 = vmatpush1.msra.mxu0 %v69
    %268 = vmatprep.subr.mxu0 0.0
    %269 = vmatpush1.msra.mxu0 %v70
    %270 = vmatprep.subr.mxu0 0.0
    %271 = vmatpush1.msra.mxu0 %v71
    %272 = vmatprep.subr.mxu0 0.0
    %273 = vmatpush1.msra.mxu0 %v72
    %274 = vmatprep.subr.mxu0 0.0
    %275 = vmatpush1.msra.mxu0 %v73
    %276 = vmatprep.mubr.f32.mxu0 %v179
    %277 = vmatmul.mubr.f32.gmra.mrb[0].mxu0 %v175
    %v278 = vpop.f32.mrb[0].mxu0
    %v279 = vadd.f32 %v170, %v278
    %v280 = vpop.f32.mrb[0].mxu0
    %281 = vdwg.mxu0
    %282 = vmatprep.subr.mxu0 0.0
    %283 = vmatpush1.msra.mxu0 %v74
    %284 = vmatprep.subr.mxu0 0.0
    %285 = vmatpush1.msra.mxu0 %v75
    %286 = vmatprep.subr.mxu0 0.0
    %287 = vmatpush1.msra.mxu0 %v76
    %288 = vmatprep.subr.mxu0 0.0
    %289 = vmatpush1.msra.mxu0 %v77
    %290 = vmatprep.subr.mxu0 0.0
    %291 = vmatpush1.msra.mxu0 %v78
    %292 = vmatprep.subr.mxu0 0.0
    %293 = vmatpush1.msra.mxu0 %v79
    %294 = vmatprep.subr.mxu0 0.0
    %295 = vmatpush1.msra.mxu0 %v80
    %296 = vmatprep.subr.mxu0 0.0
    %297 = vmatpush1.msra.mxu0 %v81
    %298 = vmatprep.subr.mxu0 0.0
    %299 = vmatpush1.msra.mxu0 %v82
    %300 = vmatprep.subr.mxu0 0.0
    %301 = vmatpush1.msra.mxu0 %v83
    %302 = vmatprep.subr.mxu0 0.0
    %303 = vmatpush1.msra.mxu0 %v84
    %304 = vmatprep.subr.mxu0 0.0
    %305 = vmatpush1.msra.mxu0 %v85
    %306 = vmatprep.subr.mxu0 0.0
    %307 = vmatpush1.msra.mxu0 %v86
    %308 = vmatprep.subr.mxu0 0.0
    %309 = vmatpush1.msra.mxu0 %v87
    %310 = vmatprep.subr.mxu0 0.0
    %311 = vmatpush1.msra.mxu0 %v88
    %312 = vmatprep.subr.mxu0 0.0
    %313 = vmatpush1.msra.mxu0 %v89
    %314 = vmatprep.subr.mxu0 0.0
    %315 = vmatpush1.msra.mxu0 %v90
    %316 = vmatprep.subr.mxu0 0.0
    %317 = vmatpush1.msra.mxu0 %v91
    %318 = vmatprep.subr.mxu0 0.0
    %319 = vmatpush1.msra.mxu0 %v92
    %320 = vmatprep.subr.mxu0 0.0
    %321 = vmatpush1.msra.mxu0 %v93
    %322 = vmatprep.subr.mxu0 0.0
    %323 = vmatpush1.msra.mxu0 %v94
    %324 = vmatprep.subr.mxu0 0.0
    %325 = vmatpush1.msra.mxu0 %v95
    %326 = vmatprep.subr.mxu0 0.0
    %327 = vmatpush1.msra.mxu0 %v96
    %328 = vmatprep.subr.mxu0 0.0
    %329 = vmatpush1.msra.mxu0 %v97
    %330 = vmatprep.subr.mxu0 0.0
    %331 = vmatpush1.msra.mxu0 %v98
    %332 = vmatprep.subr.mxu0 0.0
    %333 = vmatpush1.msra.mxu0 %v99
    %334 = vmatprep.subr.mxu0 0.0
    %335 = vmatpush1.msra.mxu0 %v100
    %336 = vmatprep.subr.mxu0 0.0
    %337 = vmatpush1.msra.mxu0 %v101
    %338 = vmatprep.subr.mxu0 0.0
    %339 = vmatpush1.msra.mxu0 %v102
    %340 = vmatprep.subr.mxu0 0.0
    %341 = vmatpush1.msra.mxu0 %v103
    %342 = vmatprep.subr.mxu0 0.0
    %343 = vmatpush1.msra.mxu0 %v104
    %344 = vmatprep.subr.mxu0 0.0
    %345 = vmatpush1.msra.mxu0 %v105
    %346 = vmatprep.mubr.f32.mxu0 %v187
    %347 = vmatmul.mubr.f32.gmra.mrb[0].mxu0 %v183
    %v348 = vpop.f32.mrb[0].mxu0
    %v349 = vadd.f32 %v279, %v348
    %v350 = vpop.f32.mrb[0].mxu0
    %351 = vdwg.mxu0
    %352 = vmatprep.subr.mxu0 0.0
    %353 = vmatpush1.msra.mxu0 %v106
    %354 = vmatprep.subr.mxu0 0.0
    %355 = vmatpush1.msra.mxu0 %v107
    %356 = vmatprep.subr.mxu0 0.0
    %357 = vmatpush1.msra.mxu0 %v108
    %358 = vmatprep.subr.mxu0 0.0
    %359 = vmatpush1.msra.mxu0 %v109
    %360 = vmatprep.subr.mxu0 0.0
    %361 = vmatpush1.msra.mxu0 %v110
    %362 = vmatprep.subr.mxu0 0.0
    %363 = vmatpush1.msra.mxu0 %v111
    %364 = vmatprep.subr.mxu0 0.0
    %365 = vmatpush1.msra.mxu0 %v112
    %366 = vmatprep.subr.mxu0 0.0
    %367 = vmatpush1.msra.mxu0 %v113
    %368 = vmatprep.subr.mxu0 0.0
    %369 = vmatpush1.msra.mxu0 %v114
    %370 = vmatprep.subr.mxu0 0.0
    %371 = vmatpush1.msra.mxu0 %v115
    %372 = vmatprep.subr.mxu0 0.0
    %373 = vmatpush1.msra.mxu0 %v116
    %374 = vmatprep.subr.mxu0 0.0
    %375 = vmatpush1.msra.mxu0 %v117
    %376 = vmatprep.subr.mxu0 0.0
    %377 = vmatpush1.msra.mxu0 %v118
    %378 = vmatprep.subr.mxu0 0.0
    %379 = vmatpush1.msra.mxu0 %v119
    %380 = vmatprep.subr.mxu0 0.0
    %381 = vmatpush1.msra.mxu0 %v120
    %382 = vmatprep.subr.mxu0 0.0
    %383 = vmatpush1.msra.mxu0 %v121
    %384 = vmatprep.subr.mxu0 0.0
    %385 = vmatpush1.msra.mxu0 %v122
    %386 = vmatprep.subr.mxu0 0.0
    %387 = vmatpush1.msra.mxu0 %v123
    %388 = vmatprep.subr.mxu0 0.0
    %389 = vmatpush1.msra.mxu0 %v124
    %390 = vmatprep.subr.mxu0 0.0
    %391 = vmatpush1.msra.mxu0 %v125
    %392 = vmatprep.subr.mxu0 0.0
    %393 = vmatpush1.msra.mxu0 %v126
    %394 = vmatprep.subr.mxu0 0.0
    %395 = vmatpush1.msra.mxu0 %v127
    %396 = vmatprep.subr.mxu0 0.0
    %397 = vmatpush1.msra.mxu0 %v128
    %398 = vmatprep.subr.mxu0 0.0
    %399 = vmatpush1.msra.mxu0 %v129
    %400 = vmatprep.subr.mxu0 0.0
    %401 = vmatpush1.msra.mxu0 %v130
    %402 = vmatprep.subr.mxu0 0.0
    %403 = vmatpush1.msra.mxu0 %v131
    %404 = vmatprep.subr.mxu0 0.0
    %405 = vmatpush1.msra.mxu0 %v132
    %406 = vmatprep.subr.mxu0 0.0
    %407 = vmatpush1.msra.mxu0 %v133
    %408 = vmatprep.subr.mxu0 0.0
    %409 = vmatpush1.msra.mxu0 %v134
    %410 = vmatprep.subr.mxu0 0.0
    %411 = vmatpush1.msra.mxu0 %v135
    %412 = vmatprep.subr.mxu0 0.0
    %413 = vmatpush1.msra.mxu0 %v136
    %414 = vmatprep.subr.mxu0 0.0
    %415 = vmatpush1.msra.mxu0 %v137
    %416 = vmatprep.mubr.f32.mxu0 %v195
    %417 = vmatmul.mubr.f32.gmra.mrb[0].mxu0 %v191
    %v418 = vpop.f32.mrb[0].mxu0
    %v419 = vadd.f32 %v349, %v418
    %v420 = vpop.f32.mrb[0].mxu0
    %421 = vdwg.mxu0
    %422 = vmatprep.subr.mxu0 0.0
    %423 = vmatpush1.msra.mxu0 %v138
    %424 = vmatprep.subr.mxu0 0.0
    %425 = vmatpush1.msra.mxu0 %v139
    %426 = vmatprep.subr.mxu0 0.0
    %427 = vmatpush1.msra.mxu0 %v140
    %428 = vmatprep.subr.mxu0 0.0
    %429 = vmatpush1.msra.mxu0 %v141
    %430 = vmatprep.subr.mxu0 0.0
    %431 = vmatpush1.msra.mxu0 %v142
    %432 = vmatprep.subr.mxu0 0.0
    %433 = vmatpush1.msra.mxu0 %v143
    %434 = vmatprep.subr.mxu0 0.0
    %435 = vmatpush1.msra.mxu0 %v144
    %436 = vmatprep.subr.mxu0 0.0
    %437 = vmatpush1.msra.mxu0 %v145
    %438 = vmatprep.subr.mxu0 0.0
    %439 = vmatpush1.msra.mxu0 %v146
    %440 = vmatprep.subr.mxu0 0.0
    %441 = vmatpush1.msra.mxu0 %v147
    %442 = vmatprep.subr.mxu0 0.0
    %443 = vmatpush1.msra.mxu0 %v148
    %444 = vmatprep.subr.mxu0 0.0
    %445 = vmatpush1.msra.mxu0 %v149
    %446 = vmatprep.subr.mxu0 0.0
    %447 = vmatpush1.msra.mxu0 %v150
    %448 = vmatprep.subr.mxu0 0.0
    %449 = vmatpush1.msra.mxu0 %v151
    %450 = vmatprep.subr.mxu0 0.0
    %451 = vmatpush1.msra.mxu0 %v152
    %452 = vmatprep.subr.mxu0 0.0
    %453 = vmatpush1.msra.mxu0 %v153
    %454 = vmatprep.subr.mxu0 0.0
    %455 = vmatpush1.msra.mxu0 %v154
    %456 = vmatprep.subr.mxu0 0.0
    %457 = vmatpush1.msra.mxu0 %v155
    %458 = vmatprep.subr.mxu0 0.0
    %459 = vmatpush1.msra.mxu0 %v156
    %460 = vmatprep.subr.mxu0 0.0
    %461 = vmatpush1.msra.mxu0 %v157
    %462 = vmatprep.subr.mxu0 0.0
    %463 = vmatpush1.msra.mxu0 %v158
    %464 = vmatprep.subr.mxu0 0.0
    %465 = vmatpush1.msra.mxu0 %v159
    %466 = vmatprep.subr.mxu0 0.0
    %467 = vmatpush1.msra.mxu0 %v160
    %468 = vmatprep.subr.mxu0 0.0
    %469 = vmatpush1.msra.mxu0 %v161
    %470 = vmatprep.subr.mxu0 0.0
    %471 = vmatpush1.msra.mxu0 %v162
    %472 = vmatprep.subr.mxu0 0.0
    %473 = vmatpush1.msra.mxu0 %v163
    %474 = vmatprep.subr.mxu0 0.0
    %475 = vmatpush1.msra.mxu0 %v164
    %476 = vmatprep.subr.mxu0 0.0
    %477 = vmatpush1.msra.mxu0 %v165
    %478 = vmatprep.subr.mxu0 0.0
    %479 = vmatpush1.msra.mxu0 %v166
    %480 = vmatprep.subr.mxu0 0.0
    %481 = vmatpush1.msra.mxu0 %v167
    %482 = vmatprep.subr.mxu0 0.0
    %483 = vmatpush1.msra.mxu0 %v168
    %484 = vmatprep.subr.mxu0 0.0
    %485 = vmatpush1.msra.mxu0 %v169
    %486 = vmatprep.mubr.f32.mxu0 %v203
    %487 = vmatmul.mubr.f32.gmra.mrb[0].mxu0 %v199
    %v488 = vpop.f32.mrb[0].mxu0
    %v489 = vadd.f32 %v419, %v488
    %v490 = vpop.f32.mrb[0].mxu0
    %491 = vdwg.mxu0
    %492 = vst [vmem:[#allocation7] sm:$0x1] %v489
    // Predicated region
    $region22: #{tpu_custom_call.1} parent=1 // pred_check
      _
    $region23: #{tpu_custom_call.1} parent=1 // pred_check_branch
      %494 = sbr.rel (0) target = $region25
    $region24: #{tpu_custom_call.1} parent=1 // pred_region
      %s496 = ssub.s32 16, 16
      %497 = vsyncadd [#allocation4], %s496
      %s499 = sshll.u32 [#allocation7], 4
      %s500 = int_to_ptr.vmem [resolvable:$true] %s499
      %502 = dma.vmem_to_hbm [thread:$0]  %s500, 16, %s3, [#allocation4]
    $region25: #{tpu_custom_call.1} parent=1 // pred_fallthru
      _
    // Predicated region
    $region26: #{tpu_custom_call.1} parent=1 // pred_check
      _
    $region27: #{tpu_custom_call.1} parent=1 // pred_check_branch
      %504 = sbr.rel (0) target = $region29
    $region28: #{tpu_custom_call.1} parent=1 // pred_region
      %505 = dma.done [#allocation4], 16
    $region29: #{tpu_custom_call.1} parent=1 // pred_fallthru
      _
    %506 = vsyncpa [#allocation3], 1
    %507 = vsyncpa [#allocation6], 1
    %508 = vsyncpa [#allocation4], 1

</llo_original>
